<compile_context>
chip_gen: v7x
topology: tpu7x:2x2x1
jax: 0.10.0
libtpu: 0.0.40
codegen_flags: <defaults>
</compile_context>

<pallas_src>
import math
from functools import partial

import jax
import jax.numpy as jnp
from jax.experimental import pallas as pl
from jax.experimental.pallas import tpu as pltpu


LANE = 128            # TPU lane width (last dim)
SUBLANE = 8           # f32 sublane granularity (second-to-last dim)
MAX_TM = 1024         # largest batch tile (1024 x 128 f32 tile ~ 0.5 MiB)
_TM_BUCKETS = (8, 16, 32, 64, 128, 256, 512, 1024)


def _round_up(x, m):
    return ((x + m - 1) // m) * m


def _fused_mlp_kernel(x_ref, *refs):
    """refs = (w0, b0, w1, b1, ..., o_ref); one batch tile per grid step."""
    o_ref = refs[-1]
    wb = refs[:-1]
    h = x_ref[...].astype(jnp.float32)
    n_layers = len(wb) // 2
    for li in range(n_layers):
        w = wb[2 * li][...]            # bf16 (F_in_pad, F_out_pad), lane-dense
        b = wb[2 * li + 1][...]        # f32  (1, F_out_pad), broadcasts
        # bf16 operands on the MXU, f32 accumulation.
        y = jnp.dot(h.astype(jnp.bfloat16), w,
                    preferred_element_type=jnp.float32)
        # f32 epilogue on the VPU (free filler under the MXU; bf16 elementwise
        # would be emulated on v5e).
        h = jnp.maximum(y + b, 0.0)
    o_ref[...] = h.astype(o_ref.dtype)


def _invariant_spec(shape, single_buffer):
    """BlockSpec for a grid-invariant (weight/bias) input."""
    idx_map = lambda i: (0, 0)
    if single_buffer and hasattr(pl, "Buffered"):
        # Single-buffer the weights: block index never changes, so the second
        # pipeline buffer is pure wasted VMEM.
        return pl.BlockSpec(shape, idx_map, pipeline_mode=pl.Buffered(1))
    return pl.BlockSpec(shape, idx_map)


@partial(jax.jit, static_argnames=("tm", "vmem_limit_bytes", "single_buffer"))
def _fused_mlp(x_pad, padded_params, tm, vmem_limit_bytes, single_buffer):
    """relu-MLP over padded input. x_pad: (B_pad, F0_pad), B_pad % tm == 0."""
    b_pad, f0_pad = x_pad.shape
    f_last_pad = padded_params[-1][0].shape[1]
    n_tiles = b_pad // tm

    flat_inputs = [x_pad]
    in_specs = [pl.BlockSpec((tm, f0_pad), lambda i: (i, 0))]
    for (w, b2) in padded_params:
        fin_pad, fout_pad = w.shape
        flat_inputs.append(w)
        in_specs.append(_invariant_spec((fin_pad, fout_pad), single_buffer))
        flat_inputs.append(b2)
        in_specs.append(_invariant_spec((1, fout_pad), single_buffer))

    return pl.pallas_call(
        _fused_mlp_kernel,
        out_shape=jax.ShapeDtypeStruct((b_pad, f_last_pad), x_pad.dtype),
        grid_spec=pl.GridSpec(
            grid=(n_tiles,),
            in_specs=in_specs,
            out_specs=pl.BlockSpec((tm, f_last_pad), lambda i: (i, 0)),
        ),
        compiler_params=pltpu.CompilerParams(
            dimension_semantics=("parallel",),       # batch tiles → both TCs on v7x
            vmem_limit_bytes=vmem_limit_bytes,       # explicit, generation-aware
        ),
    )(*flat_inputs)


class InMLPPallas:
    """JAX/Pallas re-implementation of the PyTorch InMLP module.

    forward(x): for each Linear layer, x = relu(layer(x)).
    """

    def __init__(self, input_sample, network_structure, key):
        input_features = input_sample.shape[-1]
        if isinstance(network_structure, list):
            dims = [input_features] + list(network_structure)
        else:
            dims = [input_features, int(network_structure)]

        self.params = []          # unpadded f32 (w, b): reference / inspection
        self.padded_params = []   # lane-dense padded (w bf16, b f32 (1,F)) for the kernel
        for li in range(len(dims) - 1):
            fan_in, fan_out = dims[li], dims[li + 1]
            key, kw, kb = jax.random.split(key, 3)
            # Match nn.Linear default init: U(-1/sqrt(fan_in), 1/sqrt(fan_in))
            bound = 1.0 / math.sqrt(fan_in)
            w = jax.random.uniform(kw, (fan_in, fan_out), jnp.float32, -bound, bound)
            b = jax.random.uniform(kb, (fan_out,), jnp.float32, -bound, bound)
            self.params.append((w, b))

            fin_pad = _round_up(fan_in, LANE)
            fout_pad = _round_up(fan_out, LANE)
            w_pad = jnp.zeros((fin_pad, fout_pad), jnp.float32)
            w_pad = w_pad.at[:fan_in, :fan_out].set(w)
            b_pad = jnp.zeros((1, fout_pad), jnp.float32)
            b_pad = b_pad.at[0, :fan_out].set(b)      # bias reshape hoisted here
            # Store weights in bf16: MXU-native operands, half the DMA/VMEM.
            self.padded_params.append((w_pad.astype(jnp.bfloat16), b_pad))

        self._dims = dims
        self._in_features = dims[0]
        self._out_features = dims[-1]
        self._feat_pads = [_round_up(d, LANE) for d in dims]
        self._f0_pad = self._feat_pads[0]
        self._f_last_pad = self._feat_pads[-1]
        self._weight_bytes = sum(
            w.size * w.dtype.itemsize + b.size * b.dtype.itemsize
            for (w, b) in self.padded_params
        )
        self._single_buffer_ok = None            # decided on first forward()
        self._vmem_capacity = self._query_vmem_capacity()

    @staticmethod
    def _query_vmem_capacity():
        try:
            info = pltpu.get_tpu_info()
            cap = getattr(info, "vmem_capacity_bytes", None)
            if cap:
                return int(cap)
        except Exception:
            pass
        return 64 << 20   # conservative default: v7x per-TensorCore VMEM

    def _tile_footprint_bytes(self, tm):
        # Worst-case budget: double-buffered activation tiles and
        # double-buffered weights (the Buffered(1) path only shrinks this).
        f_max = max(self._feat_pads)
        bytes_in = 2 * tm * self._f0_pad * 4           # input tile, f32, 2 bufs
        bytes_out = 2 * tm * self._f_last_pad * 4      # output tile, f32, 2 bufs
        bytes_act = tm * f_max * (4 + 2)               # live f32 h + its bf16 cast
        return 2 * self._weight_bytes + bytes_in + bytes_out + bytes_act

    def _pick_tm(self, b8):
        # Keep >= 2 grid steps for medium/large batches so both v7x
        # TensorCores get work on the "parallel" batch axis.
        cap_batch = max(SUBLANE, b8 // 2) if b8 > 128 else b8
        budget = self._vmem_capacity // 2
        tm = SUBLANE
        for t in _TM_BUCKETS:
            if t > MAX_TM or t > cap_batch:
                break
            if self._tile_footprint_bytes(t) <= budget:
                tm = t
        return tm

    def forward(self, x):
        # Glue: flatten any leading dims so the kernel sees (B, F).
        lead = x.shape[:-1]
        h = x.reshape(-1, x.shape[-1])
        B, F0 = h.shape

        b8 = max(_round_up(B, SUBLANE), SUBLANE)
        tm = self._pick_tm(b8)
        b_pad = _round_up(b8, tm)

        # Skip the extra HBM round trip when the input is already aligned.
        if b_pad == B and F0 == self._f0_pad:
            x_pad = h
        else:
            x_pad = jnp.zeros((b_pad, self._f0_pad), h.dtype).at[:B, :F0].set(h)

        footprint = self._tile_footprint_bytes(tm)
        vmem_limit = int(min(max(2 * footprint, 32 << 20),
                             (self._vmem_capacity * 7) // 8))

        params = tuple(self.padded_params)
        if self._single_buffer_ok is None:
            try:
                out_pad = jax.block_until_ready(
                    _fused_mlp(x_pad, params, tm, vmem_limit, True))
                self._single_buffer_ok = True
            except Exception:
                # Installed JAX rejected pipeline_mode=Buffered(1); use the
                # default double-buffered (but still never re-DMA'd) weights.
                self._single_buffer_ok = False
                out_pad = _fused_mlp(x_pad, params, tm, vmem_limit, False)
        else:
            out_pad = _fused_mlp(x_pad, params, tm, vmem_limit,
                                 self._single_buffer_ok)

        # Skip the output-slice copy when no padding was added.
        if b_pad == B and self._f_last_pad == self._out_features:
            out = out_pad
        else:
            out = out_pad[:B, :self._out_features]
        return out.reshape(*lead, self._out_features)


if __name__ == "__main__":
    key = jax.random.PRNGKey(0)
    key, kx = jax.random.split(key)

    # Small shapes consistent with the module: batch=4, input_features=16,
    # network_structure=[32, 32].
    x = jax.random.normal(kx, (4, 16), jnp.float32)
    network_structure = [32, 32]

    model = InMLPPallas(x, network_structure, key)
    out = jax.block_until_ready(model.forward(x))

    # Sanity check against a plain-JAX f32 reference of the same forward pass.
    ref = x
    for w, b in model.params:
        ref = jnp.maximum(ref @ w + b, 0.0)
    assert out.shape == (4, network_structure[-1])
    # bf16 MXU operands (f32 accumulation) → loosened tolerance vs f32 ref.
    err = float(jnp.max(jnp.abs(out - ref)))
    assert jnp.allclose(out, ref, atol=3e-2, rtol=3e-2), f"max abs err={err}"

    print("KERNEL_OK")
</pallas_src>

<mosaic_0001>
module attributes {stable_mosaic.version = 11 : i64} {
  func.func @_fused_mlp_kernel(%arg0: i32, %arg1: memref<8x128xf32, #tpu.memory_space<vmem>>, %arg2: memref<128x128xbf16, #tpu.memory_space<vmem>>, %arg3: memref<1x128xf32, #tpu.memory_space<vmem>>, %arg4: memref<128x128xbf16, #tpu.memory_space<vmem>>, %arg5: memref<1x128xf32, #tpu.memory_space<vmem>>, %arg6: memref<8x128xf32, #tpu.memory_space<vmem>>) attributes {dimension_semantics = [#tpu.dimension_semantics<parallel>], iteration_bounds = array<i64: 1>, scalar_prefetch = 0 : i64, scratch_operands = 0 : i64, tpu.core_type = #tpu.core_type<tc>, window_params = [{transform_indices = @transform_0, window_bounds = array<i64: 8, 128>}, {pipeline_mode = #tpu.pipeline_mode<synchronous>, transform_indices = @transform_1, window_bounds = array<i64: 128, 128>}, {pipeline_mode = #tpu.pipeline_mode<synchronous>, transform_indices = @transform_2, window_bounds = array<i64: 1, 128>}, {pipeline_mode = #tpu.pipeline_mode<synchronous>, transform_indices = @transform_3, window_bounds = array<i64: 128, 128>}, {pipeline_mode = #tpu.pipeline_mode<synchronous>, transform_indices = @transform_4, window_bounds = array<i64: 1, 128>}, {transform_indices = @transform_5, window_bounds = array<i64: 8, 128>}]} {
    %c0 = arith.constant 0 : index
    %c0_0 = arith.constant 0 : index
    %0 = vector.load %arg1[%c0, %c0_0] : memref<8x128xf32, #tpu.memory_space<vmem>>, vector<8x128xf32>
    %c0_1 = arith.constant 0 : index
    %c0_2 = arith.constant 0 : index
    %1 = vector.load %arg2[%c0_1, %c0_2] : memref<128x128xbf16, #tpu.memory_space<vmem>>, vector<128x128xbf16>
    %c0_3 = arith.constant 0 : index
    %c0_4 = arith.constant 0 : index
    %2 = vector.load %arg3[%c0_3, %c0_4] : memref<1x128xf32, #tpu.memory_space<vmem>>, vector<1x128xf32>
    %3 = arith.truncf %0 : vector<8x128xf32> to vector<8x128xbf16>
    %cst = arith.constant dense<0.000000e+00> : vector<8x128xf32>
    %4 = tpu.matmul %3, %1, %cst {dimension_numbers = #tpu.dot_dimension_numbers<[1], [0], [0], [1], [0, 0, 1, 1], [], []>} : vector<8x128xbf16>, vector<128x128xbf16>, vector<8x128xf32> -> vector<8x128xf32>
    %5 = vector.broadcast %2 : vector<1x128xf32> to vector<8x128xf32>
    %6 = arith.addf %4, %5 : vector<8x128xf32>
    %cst_5 = arith.constant 0.000000e+00 : f32
    %7 = vector.broadcast %cst_5 : f32 to vector<8x128xf32>
    %8 = arith.maximumf %6, %7 : vector<8x128xf32>
    %c0_6 = arith.constant 0 : index
    %c0_7 = arith.constant 0 : index
    %9 = vector.load %arg4[%c0_6, %c0_7] : memref<128x128xbf16, #tpu.memory_space<vmem>>, vector<128x128xbf16>
    %c0_8 = arith.constant 0 : index
    %c0_9 = arith.constant 0 : index
    %10 = vector.load %arg5[%c0_8, %c0_9] : memref<1x128xf32, #tpu.memory_space<vmem>>, vector<1x128xf32>
    %11 = arith.truncf %8 : vector<8x128xf32> to vector<8x128xbf16>
    %cst_10 = arith.constant dense<0.000000e+00> : vector<8x128xf32>
    %12 = tpu.matmul %11, %9, %cst_10 {dimension_numbers = #tpu.dot_dimension_numbers<[1], [0], [0], [1], [0, 0, 1, 1], [], []>} : vector<8x128xbf16>, vector<128x128xbf16>, vector<8x128xf32> -> vector<8x128xf32>
    %13 = vector.broadcast %10 : vector<1x128xf32> to vector<8x128xf32>
    %14 = arith.addf %12, %13 : vector<8x128xf32>
    %cst_11 = arith.constant 0.000000e+00 : f32
    %15 = vector.broadcast %cst_11 : f32 to vector<8x128xf32>
    %16 = arith.maximumf %14, %15 : vector<8x128xf32>
    %c0_12 = arith.constant 0 : index
    %c0_13 = arith.constant 0 : index
    %17 = vector.load %arg6[%c0_12, %c0_13] : memref<8x128xf32, #tpu.memory_space<vmem>>, vector<8x128xf32>
    tpu.vector_store %arg6[%c0_12, %c0_13], %16 {strides = array<i32>} : memref<8x128xf32, #tpu.memory_space<vmem>>, vector<8x128xf32>,
    return
  }
  func.func @transform_0(%arg0: i32) -> (i32, i32) {
    %c0_i32 = arith.constant 0 : i32
    %c0_i32_0 = arith.constant 0 : i32
    return %arg0, %c0_i32 : i32, i32
  }
  func.func @transform_1(%arg0: i32) -> (i32, i32) {
    %c0_i32 = arith.constant 0 : i32
    %c0_i32_0 = arith.constant 0 : i32
    %c0_i32_1 = arith.constant 0 : i32
    return %c0_i32, %c0_i32_0 : i32, i32
  }
  func.func @transform_2(%arg0: i32) -> (i32, i32) {
    %c0_i32 = arith.constant 0 : i32
    %c0_i32_0 = arith.constant 0 : i32
    %c0_i32_1 = arith.constant 0 : i32
    return %c0_i32, %c0_i32_0 : i32, i32
  }
  func.func @transform_3(%arg0: i32) -> (i32, i32) {
    %c0_i32 = arith.constant 0 : i32
    %c0_i32_0 = arith.constant 0 : i32
    %c0_i32_1 = arith.constant 0 : i32
    return %c0_i32, %c0_i32_0 : i32, i32
  }
  func.func @transform_4(%arg0: i32) -> (i32, i32) {
    %c0_i32 = arith.constant 0 : i32
    %c0_i32_0 = arith.constant 0 : i32
    %c0_i32_1 = arith.constant 0 : i32
    return %c0_i32, %c0_i32_0 : i32, i32
  }
  func.func @transform_5(%arg0: i32) -> (i32, i32) {
    %c0_i32 = arith.constant 0 : i32
    %c0_i32_0 = arith.constant 0 : i32
    return %arg0, %c0_i32 : i32, i32
  }
}

module attributes {stable_mosaic.version = 11 : i64} {
  func.func @_fused_mlp_kernel(%arg0: i32, %arg1: memref<8x128xf32, #tpu.memory_space<vmem>>, %arg2: memref<128x128xbf16, #tpu.memory_space<vmem>>, %arg3: memref<1x128xf32, #tpu.memory_space<vmem>>, %arg4: memref<128x128xbf16, #tpu.memory_space<vmem>>, %arg5: memref<1x128xf32, #tpu.memory_space<vmem>>, %arg6: memref<8x128xf32, #tpu.memory_space<vmem>>) attributes {dimension_semantics = [#tpu.dimension_semantics<parallel>], iteration_bounds = array<i64: 1>, scalar_prefetch = 0 : i64, scratch_operands = 0 : i64, tpu.core_type = #tpu.core_type<tc>, window_params = [{transform_indices = @transform_0, window_bounds = array<i64: 8, 128>}, {pipeline_mode = #tpu.pipeline_mode<synchronous>, transform_indices = @transform_1, window_bounds = array<i64: 128, 128>}, {pipeline_mode = #tpu.pipeline_mode<synchronous>, transform_indices = @transform_2, window_bounds = array<i64: 1, 128>}, {pipeline_mode = #tpu.pipeline_mode<synchronous>, transform_indices = @transform_3, window_bounds = array<i64: 128, 128>}, {pipeline_mode = #tpu.pipeline_mode<synchronous>, transform_indices = @transform_4, window_bounds = array<i64: 1, 128>}, {transform_indices = @transform_5, window_bounds = array<i64: 8, 128>}]} {
    %c0 = arith.constant 0 : index
    %c0_0 = arith.constant 0 : index
    %0 = vector.load %arg1[%c0, %c0_0] : memref<8x128xf32, #tpu.memory_space<vmem>>, vector<8x128xf32>
    %c0_1 = arith.constant 0 : index
    %c0_2 = arith.constant 0 : index
    %1 = vector.load %arg2[%c0_1, %c0_2] : memref<128x128xbf16, #tpu.memory_space<vmem>>, vector<128x128xbf16>
    %c0_3 = arith.constant 0 : index
    %c0_4 = arith.constant 0 : index
    %2 = vector.load %arg3[%c0_3, %c0_4] : memref<1x128xf32, #tpu.memory_space<vmem>>, vector<1x128xf32>
    %3 = arith.truncf %0 : vector<8x128xf32> to vector<8x128xbf16>
    %cst = arith.constant dense<0.000000e+00> : vector<8x128xf32>
    %4 = tpu.matmul %3, %1, %cst {dimension_numbers = #tpu.dot_dimension_numbers<[1], [0], [0], [1], [0, 0, 1, 1], [], []>} : vector<8x128xbf16>, vector<128x128xbf16>, vector<8x128xf32> -> vector<8x128xf32>
    %5 = vector.broadcast %2 : vector<1x128xf32> to vector<8x128xf32>
    %6 = arith.addf %4, %5 : vector<8x128xf32>
    %cst_5 = arith.constant 0.000000e+00 : f32
    %7 = vector.broadcast %cst_5 : f32 to vector<8x128xf32>
    %8 = arith.maximumf %6, %7 : vector<8x128xf32>
    %c0_6 = arith.constant 0 : index
    %c0_7 = arith.constant 0 : index
    %9 = vector.load %arg4[%c0_6, %c0_7] : memref<128x128xbf16, #tpu.memory_space<vmem>>, vector<128x128xbf16>
    %c0_8 = arith.constant 0 : index
    %c0_9 = arith.constant 0 : index
    %10 = vector.load %arg5[%c0_8, %c0_9] : memref<1x128xf32, #tpu.memory_space<vmem>>, vector<1x128xf32>
    %11 = arith.truncf %8 : vector<8x128xf32> to vector<8x128xbf16>
    %cst_10 = arith.constant dense<0.000000e+00> : vector<8x128xf32>
    %12 = tpu.matmul %11, %9, %cst_10 {dimension_numbers = #tpu.dot_dimension_numbers<[1], [0], [0], [1], [0, 0, 1, 1], [], []>} : vector<8x128xbf16>, vector<128x128xbf16>, vector<8x128xf32> -> vector<8x128xf32>
    %13 = vector.broadcast %10 : vector<1x128xf32> to vector<8x128xf32>
    %14 = arith.addf %12, %13 : vector<8x128xf32>
    %cst_11 = arith.constant 0.000000e+00 : f32
    %15 = vector.broadcast %cst_11 : f32 to vector<8x128xf32>
    %16 = arith.maximumf %14, %15 : vector<8x128xf32>
    %c0_12 = arith.constant 0 : index
    %c0_13 = arith.constant 0 : index
    %17 = vector.load %arg6[%c0_12, %c0_13] : memref<8x128xf32, #tpu.memory_space<vmem>>, vector<8x128xf32>
    tpu.vector_store %arg6[%c0_12, %c0_13], %16 {strides = array<i32>} : memref<8x128xf32, #tpu.memory_space<vmem>>, vector<8x128xf32>,
    return
  }
  func.func @transform_0(%arg0: i32) -> (i32, i32) {
    %c0_i32 = arith.constant 0 : i32
    %c0_i32_0 = arith.constant 0 : i32
    return %arg0, %c0_i32 : i32, i32
  }
  func.func @transform_1(%arg0: i32) -> (i32, i32) {
    %c0_i32 = arith.constant 0 : i32
    %c0_i32_0 = arith.constant 0 : i32
    %c0_i32_1 = arith.constant 0 : i32
    return %c0_i32, %c0_i32_0 : i32, i32
  }
  func.func @transform_2(%arg0: i32) -> (i32, i32) {
    %c0_i32 = arith.constant 0 : i32
    %c0_i32_0 = arith.constant 0 : i32
    %c0_i32_1 = arith.constant 0 : i32
    return %c0_i32, %c0_i32_0 : i32, i32
  }
  func.func @transform_3(%arg0: i32) -> (i32, i32) {
    %c0_i32 = arith.constant 0 : i32
    %c0_i32_0 = arith.constant 0 : i32
    %c0_i32_1 = arith.constant 0 : i32
    return %c0_i32, %c0_i32_0 : i32, i32
  }
  func.func @transform_4(%arg0: i32) -> (i32, i32) {
    %c0_i32 = arith.constant 0 : i32
    %c0_i32_0 = arith.constant 0 : i32
    %c0_i32_1 = arith.constant 0 : i32
    return %c0_i32, %c0_i32_0 : i32, i32
  }
  func.func @transform_5(%arg0: i32) -> (i32, i32) {
    %c0_i32 = arith.constant 0 : i32
    %c0_i32_0 = arith.constant 0 : i32
    return %arg0, %c0_i32 : i32, i32
  }
}

</mosaic_0001>

<llo_original>
// kernel: _fused_mlp.1
$region0: #{_fused_mlp.1}
  #allocation0 [shape = 'u32[]', space=smem, size = 0x4, offset = 0x4, fixed_abs, tag = 'smem constant byte address 0x4 - core index']
  #allocation1 [shape = 'u32[144,128]{1,0:T(1,128)}', space=vmem, size = 0x12000, scoped, tag = 'internal scratch']
  %s0 = inlined_call_operand.hbm [shape: f32[8,128], index: 0, kind: input, shape index: {}]
  %s1 = inlined_call_operand.hbm [shape: bf16[128,128], index: 1, kind: input, shape index: {}]
  %s2 = inlined_call_operand.vmem [shape: f32[1,128], index: 2, kind: input, shape index: {}]
  %s3 = inlined_call_operand.hbm [shape: bf16[128,128], index: 3, kind: input, shape index: {}]
  %s4 = inlined_call_operand.vmem [shape: f32[1,128], index: 4, kind: input, shape index: {}]
  %s5 = inlined_call_operand.hbm [shape: f32[8,128], index: 5, kind: output, shape index: {}]
  %s6 = sld [smem:[#allocation0]]
  $region42: #{_fused_mlp.1} parent=0
    _
  %s8 = ssub.s32 1, %s6
  %s9 = scalar_select 0, %s8, %s6
  $region1: #{_fused_mlp.1} parent=0
    #allocation2 [shape = 'u8[4096]{0}', space=vmem, size = 0x1000, scoped, tag = 'input window, operand 0, single buffered']
    #allocation3 [shape = 's32[1]{0}', space=sflag, size = 0x4, scoped, tag = 'scoped memory for _fused_mlp.1']
    #allocation4 [shape = 's32[1]{0}', space=sflag, size = 0x4, scoped, tag = 'scoped memory for _fused_mlp.1']
    #allocation5 [shape = 'u8[32768]{0}', space=vmem, size = 0x8000, scoped, tag = 'input window, operand 1, single buffered']
    #allocation6 [shape = 's32[1]{0}', space=sflag, size = 0x4, scoped, tag = 'scoped memory for _fused_mlp.1']
    #allocation7 [shape = 'u8[32768]{0}', space=vmem, size = 0x8000, scoped, tag = 'input window, operand 3, single buffered']
    #allocation8 [shape = 'u8[4096]{0}', space=vmem, size = 0x1000, scoped, tag = 'output window, operand 0, single buffered']
    %10 = vsyncpa [#allocation3], 0
    %11 = vsyncpa [#allocation6], 0
    %12 = vsyncpa [#allocation4], 0
    // Predicated region
    $region2: #{_fused_mlp.1} parent=1 // pred_check
      _
    $region3: #{_fused_mlp.1} parent=1 // pred_check_branch
      %14 = sbr.rel (0) target = $region5
    $region4: #{_fused_mlp.1} parent=1 // pred_region
      %s16 = ssub.s32 128, 128
      %17 = vsyncadd [#allocation3], %s16
      %s19 = sshll.u32 [#allocation2], 4
      %s20 = int_to_ptr.vmem [resolvable:$true] %s19
      %22 = dma.hbm_to_vmem [thread:$0]  %s0, 128, %s20, [#allocation3]
    $region5: #{_fused_mlp.1} parent=1 // pred_fallthru
      _
    // Predicated region
    $region6: #{_fused_mlp.1} parent=1 // pred_check
      _
    $region7: #{_fused_mlp.1} parent=1 // pred_check_branch
      %24 = sbr.rel (0) target = $region9
    $region8: #{_fused_mlp.1} parent=1 // pred_region
      %s26 = ssub.s32 1024, 1024
      %27 = vsyncadd [#allocation6], %s26
      %s28 = sshll.u32 [#allocation5], 4
      %s29 = int_to_ptr.vmem [resolvable:$true] %s28
      %34 = dma.hbm_to_vmem [thread:$0]  %s1, 1024, %s29, [#allocation6], 64, 64, 4
    $region9: #{_fused_mlp.1} parent=1 // pred_fallthru
      _
    // Predicated region
    $region10: #{_fused_mlp.1} parent=1 // pred_check
      _
    $region11: #{_fused_mlp.1} parent=1 // pred_check_branch
      %36 = sbr.rel (0) target = $region13
    $region12: #{_fused_mlp.1} parent=1 // pred_region
      _
    $region13: #{_fused_mlp.1} parent=1 // pred_fallthru
      _
    // Predicated region
    $region14: #{_fused_mlp.1} parent=1 // pred_check
      _
    $region15: #{_fused_mlp.1} parent=1 // pred_check_branch
      %38 = sbr.rel (0) target = $region17
    $region16: #{_fused_mlp.1} parent=1 // pred_region
      %s40 = ssub.s32 1024, 1024
      %41 = vsyncadd [#allocation6], %s40
      %s42 = sshll.u32 [#allocation7], 4
      %s43 = int_to_ptr.vmem [resolvable:$true] %s42
      %48 = dma.hbm_to_vmem [thread:$0]  %s3, 1024, %s43, [#allocation6], 64, 64, 4
    $region17: #{_fused_mlp.1} parent=1 // pred_fallthru
      _
    // Predicated region
    $region18: #{_fused_mlp.1} parent=1 // pred_check
      _
    $region19: #{_fused_mlp.1} parent=1 // pred_check_branch
      %50 = sbr.rel (0) target = $region21
    $region20: #{_fused_mlp.1} parent=1 // pred_region
      _
    $region21: #{_fused_mlp.1} parent=1 // pred_fallthru
      _
    // Predicated region
    $region22: #{_fused_mlp.1} parent=1 // pred_check
      _
    $region23: #{_fused_mlp.1} parent=1 // pred_check_branch
      %52 = sbr.rel (0) target = $region25
    $region24: #{_fused_mlp.1} parent=1 // pred_region
      %53 = dma.done [#allocation3], 128
    $region25: #{_fused_mlp.1} parent=1 // pred_fallthru
      _
    // Predicated region
    $region26: #{_fused_mlp.1} parent=1 // pred_check
      _
    $region27: #{_fused_mlp.1} parent=1 // pred_check_branch
      %55 = sbr.rel (0) target = $region29
    $region28: #{_fused_mlp.1} parent=1 // pred_region
      %56 = dma.done [#allocation6], 1024
    $region29: #{_fused_mlp.1} parent=1 // pred_fallthru
      _
    // Predicated region
    $region30: #{_fused_mlp.1} parent=1 // pred_check
      _
    $region31: #{_fused_mlp.1} parent=1 // pred_check_branch
      %58 = sbr.rel (0) target = $region33
    $region32: #{_fused_mlp.1} parent=1 // pred_region
      %59 = dma.done [#allocation6], 1024
    $region33: #{_fused_mlp.1} parent=1 // pred_fallthru
      _
    %v61 = vld [vmem:[#allocation2] sm:$0xff]
    %v62 = vld [vmem:[#allocation5] sm:$0xf]
    %v63 = vld [vmem:[#allocation5 + $0x4] sm:$0xf]
    %v64 = vld [vmem:[#allocation5 + $0x8] sm:$0xf]
    %v65 = vld [vmem:[#allocation5 + $0xc] sm:$0xf]
    %v66 = vld [vmem:[#allocation5 + $0x10] sm:$0xf]
    %v67 = vld [vmem:[#allocation5 + $0x14] sm:$0xf]
    %v68 = vld [vmem:[#allocation5 + $0x18] sm:$0xf]
    %v69 = vld [vmem:[#allocation5 + $0x1c] sm:$0xf]
    %v70 = vld [vmem:[#allocation5 + $0x20] sm:$0xf]
    %v71 = vld [vmem:[#allocation5 + $0x24] sm:$0xf]
    %v72 = vld [vmem:[#allocation5 + $0x28] sm:$0xf]
    %v73 = vld [vmem:[#allocation5 + $0x2c] sm:$0xf]
    %v74 = vld [vmem:[#allocation5 + $0x30] sm:$0xf]
    %v75 = vld [vmem:[#allocation5 + $0x34] sm:$0xf]
    %v76 = vld [vmem:[#allocation5 + $0x38] sm:$0xf]
    %v77 = vld [vmem:[#allocation5 + $0x3c] sm:$0xf]
    %v78 = vld [vmem:[%s2] sm:$0x1]
    %v79 = vpack.c.bf16 %v61, %v61
    %v81 = vlaneseq
    %v82 = vshrl.u32 %v81, 7
    %v83 = vsub.s32 0, %v82
    %v84 = vrot.slane %v78, %v83
    %v102 = vunpack.c.l.b16 %v62
    %v103 = vunpack.c.l.b16 %v63
    %v104 = vunpack.c.l.b16 %v64
    %v105 = vunpack.c.l.b16 %v65
    %v106 = vunpack.c.l.b16 %v66
    %v107 = vunpack.c.l.b16 %v67
    %v108 = vunpack.c.l.b16 %v68
    %v109 = vunpack.c.l.b16 %v69
    %v110 = vunpack.c.l.b16 %v70
    %v111 = vunpack.c.l.b16 %v71
    %v112 = vunpack.c.l.b16 %v72
    %v113 = vunpack.c.l.b16 %v73
    %v114 = vunpack.c.l.b16 %v74
    %v115 = vunpack.c.l.b16 %v75
    %v116 = vunpack.c.l.b16 %v76
    %v117 = vunpack.c.l.b16 %v77
    %v118 = vpack.c.b16 %v103, %v102
    %v119 = vpack.c.b16 %v105, %v104
    %v120 = vpack.c.b16 %v107, %v106
    %v121 = vpack.c.b16 %v109, %v108
    %v122 = vpack.c.b16 %v111, %v110
    %v123 = vpack.c.b16 %v113, %v112
    %v124 = vpack.c.b16 %v115, %v114
    %v125 = vpack.c.b16 %v117, %v116
    %134 = vmatprep.subr.bf16.mxu0 0
    %135 = vmatpush1.bf16.msra.mxu0 %v118
    %136 = vmatprep.subr.bf16.mxu0 0
    %137 = vmatpush1.bf16.msra.mxu0 %v119
    %138 = vmatprep.subr.bf16.mxu0 0
    %139 = vmatpush1.bf16.msra.mxu0 %v120
    %140 = vmatprep.subr.bf16.mxu0 0
    %141 = vmatpush1.bf16.msra.mxu0 %v121
    %142 = vmatprep.subr.bf16.mxu0 0
    %143 = vmatpush1.bf16.msra.mxu0 %v122
    %144 = vmatprep.subr.bf16.mxu0 0
    %145 = vmatpush1.bf16.msra.mxu0 %v123
    %146 = vmatprep.subr.bf16.mxu0 0
    %147 = vmatpush1.bf16.msra.mxu0 %v124
    %148 = vmatprep.subr.bf16.mxu0 0
    %149 = vmatpush1.bf16.msra.mxu0 %v125
    %150 = vmatprep.subr.bf16.mxu0 0
    %151 = vmatpush1.bf16.msra.mxu0 0
    %152 = vmatprep.subr.bf16.mxu0 0
    %153 = vmatpush1.bf16.msra.mxu0 0
    %154 = vmatprep.subr.bf16.mxu0 0
    %155 = vmatpush1.bf16.msra.mxu0 0
    %156 = vmatprep.subr.bf16.mxu0 0
    %157 = vmatpush1.bf16.msra.mxu0 0
    %158 = vmatprep.subr.bf16.mxu0 0
    %159 = vmatpush1.bf16.msra.mxu0 0
    %160 = vmatprep.subr.bf16.mxu0 0
    %161 = vmatpush1.bf16.msra.mxu0 0
    %162 = vmatprep.subr.bf16.mxu0 0
    %163 = vmatpush1.bf16.msra.mxu0 0
    %164 = vmatprep.subr.bf16.mxu0 0
    %165 = vmatpush1.bf16.msra.mxu0 0
    %166 = vmatprep.mubr.bf16.mxu0 0
    %167 = vmatmul.mubr.bf16.gmra.mrb[0].mxu0 %v79
    %v168 = vpop.f32.mrb[0].mxu0
    %v169 = vadd.f32 %v84, %v168
    %v170 = vpop.f32.mrb[0].mxu0
    %v171 = vpop.f32.mrb[0].mxu0
    %v172 = vpop.f32.mrb[0].mxu0
    %173 = vdwg.mxu0
    %v174 = vmax.f32 %v169, 0.0
    %v175 = vld [vmem:[#allocation7] sm:$0xf]
    %v176 = vld [vmem:[#allocation7 + $0x4] sm:$0xf]
    %v177 = vld [vmem:[#allocation7 + $0x8] sm:$0xf]
    %v178 = vld [vmem:[#allocation7 + $0xc] sm:$0xf]
    %v179 = vld [vmem:[#allocation7 + $0x10] sm:$0xf]
    %v180 = vld [vmem:[#allocation7 + $0x14] sm:$0xf]
    %v181 = vld [vmem:[#allocation7 + $0x18] sm:$0xf]
    %v182 = vld [vmem:[#allocation7 + $0x1c] sm:$0xf]
    %v183 = vld [vmem:[#allocation7 + $0x20] sm:$0xf]
    %v184 = vld [vmem:[#allocation7 + $0x24] sm:$0xf]
    %v185 = vld [vmem:[#allocation7 + $0x28] sm:$0xf]
    %v186 = vld [vmem:[#allocation7 + $0x2c] sm:$0xf]
    %v187 = vld [vmem:[#allocation7 + $0x30] sm:$0xf]
    %v188 = vld [vmem:[#allocation7 + $0x34] sm:$0xf]
    %v189 = vld [vmem:[#allocation7 + $0x38] sm:$0xf]
    %v190 = vld [vmem:[#allocation7 + $0x3c] sm:$0xf]
    %v191 = vld [vmem:[%s4] sm:$0x1]
    %v192 = vpack.c.bf16 %v174, %v174
    %v194 = vlaneseq
    %v195 = vshrl.u32 %v194, 7
    %v196 = vsub.s32 0, %v195
    %v197 = vrot.slane %v191, %v196
    %v215 = vunpack.c.l.b16 %v175
    %v216 = vunpack.c.l.b16 %v176
    %v217 = vunpack.c.l.b16 %v177
    %v218 = vunpack.c.l.b16 %v178
    %v219 = vunpack.c.l.b16 %v179
    %v220 = vunpack.c.l.b16 %v180
    %v221 = vunpack.c.l.b16 %v181
    %v222 = vunpack.c.l.b16 %v182
    %v223 = vunpack.c.l.b16 %v183
    %v224 = vunpack.c.l.b16 %v184
    %v225 = vunpack.c.l.b16 %v185
    %v226 = vunpack.c.l.b16 %v186
    %v227 = vunpack.c.l.b16 %v187
    %v228 = vunpack.c.l.b16 %v188
    %v229 = vunpack.c.l.b16 %v189
    %v230 = vunpack.c.l.b16 %v190
    %v231 = vpack.c.b16 %v216, %v215
    %v232 = vpack.c.b16 %v218, %v217
    %v233 = vpack.c.b16 %v220, %v219
    %v234 = vpack.c.b16 %v222, %v221
    %v235 = vpack.c.b16 %v224, %v223
    %v236 = vpack.c.b16 %v226, %v225
    %v237 = vpack.c.b16 %v228, %v227
    %v238 = vpack.c.b16 %v230, %v229
    %247 = vmatprep.subr.bf16.mxu0 0
    %248 = vmatpush1.bf16.msra.mxu0 %v231
    %249 = vmatprep.subr.bf16.mxu0 0
    %250 = vmatpush1.bf16.msra.mxu0 %v232
    %251 = vmatprep.subr.bf16.mxu0 0
    %252 = vmatpush1.bf16.msra.mxu0 %v233
    %253 = vmatprep.subr.bf16.mxu0 0
    %254 = vmatpush1.bf16.msra.mxu0 %v234
    %255 = vmatprep.subr.bf16.mxu0 0
    %256 = vmatpush1.bf16.msra.mxu0 %v235
    %257 = vmatprep.subr.bf16.mxu0 0
    %258 = vmatpush1.bf16.msra.mxu0 %v236
    %259 = vmatprep.subr.bf16.mxu0 0
    %260 = vmatpush1.bf16.msra.mxu0 %v237
    %261 = vmatprep.subr.bf16.mxu0 0
    %262 = vmatpush1.bf16.msra.mxu0 %v238
    %263 = vmatprep.subr.bf16.mxu0 0
    %264 = vmatpush1.bf16.msra.mxu0 0
    %265 = vmatprep.subr.bf16.mxu0 0
    %266 = vmatpush1.bf16.msra.mxu0 0
    %267 = vmatprep.subr.bf16.mxu0 0
    %268 = vmatpush1.bf16.msra.mxu0 0
    %269 = vmatprep.subr.bf16.mxu0 0
    %270 = vmatpush1.bf16.msra.mxu0 0
    %271 = vmatprep.subr.bf16.mxu0 0
    %272 = vmatpush1.bf16.msra.mxu0 0
    %273 = vmatprep.subr.bf16.mxu0 0
    %274 = vmatpush1.bf16.msra.mxu0 0
    %275 = vmatprep.subr.bf16.mxu0 0
    %276 = vmatpush1.bf16.msra.mxu0 0
    %277 = vmatprep.subr.bf16.mxu0 0
    %278 = vmatpush1.bf16.msra.mxu0 0
    %279 = vmatprep.mubr.bf16.mxu0 0
    %280 = vmatmul.mubr.bf16.gmra.mrb[0].mxu0 %v192
    %v281 = vpop.f32.mrb[0].mxu0
    %v282 = vadd.f32 %v197, %v281
    %v283 = vpop.f32.mrb[0].mxu0
    %v284 = vpop.f32.mrb[0].mxu0
    %v285 = vpop.f32.mrb[0].mxu0
    %286 = vdwg.mxu0
    %v287 = vmax.f32 %v282, 0.0
    %288 = vst [vmem:[#allocation8] sm:$0xff] %v287
    // Predicated region
    $region34: #{_fused_mlp.1} parent=1 // pred_check
      _
    $region35: #{_fused_mlp.1} parent=1 // pred_check_branch
      %290 = sbr.rel (0) target = $region37
    $region36: #{_fused_mlp.1} parent=1 // pred_region
      %s292 = ssub.s32 128, 128
      %293 = vsyncadd [#allocation4], %s292
      %s295 = sshll.u32 [#allocation8], 4
      %s296 = int_to_ptr.vmem [resolvable:$true] %s295
      %298 = dma.vmem_to_hbm [thread:$0]  %s296, 128, %s5, [#allocation4]
    $region37: #{_fused_mlp.1} parent=1 // pred_fallthru
      _
    // Predicated region
    $region38: #{_fused_mlp.1} parent=1 // pred_check
      _
    $region39: #{_fused_mlp.1} parent=1 // pred_check_branch
      %300 = sbr.rel (0) target = $region41
    $region40: #{_fused_mlp.1} parent=1 // pred_region
      %301 = dma.done [#allocation4], 128
    $region41: #{_fused_mlp.1} parent=1 // pred_fallthru
      _
    %302 = vsyncpa [#allocation3], 1
    %303 = vsyncpa [#allocation6], 1
    %304 = vsyncpa [#allocation4], 1

// kernel: _fused_mlp.1
$region0: #{_fused_mlp.1}
  #allocation0 [shape = 'u32[]', space=smem, size = 0x4, offset = 0x4, fixed_abs, tag = 'smem constant byte address 0x4 - core index']
  #allocation1 [shape = 'u32[144,128]{1,0:T(1,128)}', space=vmem, size = 0x12000, scoped, tag = 'internal scratch']
  %s0 = inlined_call_operand.hbm [shape: f32[8,128], index: 0, kind: input, shape index: {}]
  %s1 = inlined_call_operand.hbm [shape: bf16[128,128], index: 1, kind: input, shape index: {}]
  %s2 = inlined_call_operand.vmem [shape: f32[1,128], index: 2, kind: input, shape index: {}]
  %s3 = inlined_call_operand.hbm [shape: bf16[128,128], index: 3, kind: input, shape index: {}]
  %s4 = inlined_call_operand.vmem [shape: f32[1,128], index: 4, kind: input, shape index: {}]
  %s5 = inlined_call_operand.hbm [shape: f32[8,128], index: 5, kind: output, shape index: {}]
  %s6 = sld [smem:[#allocation0]]
  $region42: #{_fused_mlp.1} parent=0
    _
  %s8 = ssub.s32 1, %s6
  %s9 = scalar_select 0, %s8, %s6
  $region1: #{_fused_mlp.1} parent=0
    #allocation2 [shape = 'u8[4096]{0}', space=vmem, size = 0x1000, scoped, tag = 'input window, operand 0, single buffered']
    #allocation3 [shape = 's32[1]{0}', space=sflag, size = 0x4, scoped, tag = 'scoped memory for _fused_mlp.1']
    #allocation4 [shape = 's32[1]{0}', space=sflag, size = 0x4, scoped, tag = 'scoped memory for _fused_mlp.1']
    #allocation5 [shape = 'u8[32768]{0}', space=vmem, size = 0x8000, scoped, tag = 'input window, operand 1, single buffered']
    #allocation6 [shape = 's32[1]{0}', space=sflag, size = 0x4, scoped, tag = 'scoped memory for _fused_mlp.1']
    #allocation7 [shape = 'u8[32768]{0}', space=vmem, size = 0x8000, scoped, tag = 'input window, operand 3, single buffered']
    #allocation8 [shape = 'u8[4096]{0}', space=vmem, size = 0x1000, scoped, tag = 'output window, operand 0, single buffered']
    %10 = vsyncpa [#allocation3], 0
    %11 = vsyncpa [#allocation6], 0
    %12 = vsyncpa [#allocation4], 0
    // Predicated region
    $region2: #{_fused_mlp.1} parent=1 // pred_check
      _
    $region3: #{_fused_mlp.1} parent=1 // pred_check_branch
      %14 = sbr.rel (0) target = $region5
    $region4: #{_fused_mlp.1} parent=1 // pred_region
      %s16 = ssub.s32 128, 128
      %17 = vsyncadd [#allocation3], %s16
      %s19 = sshll.u32 [#allocation2], 4
      %s20 = int_to_ptr.vmem [resolvable:$true] %s19
      %22 = dma.hbm_to_vmem [thread:$0]  %s0, 128, %s20, [#allocation3]
    $region5: #{_fused_mlp.1} parent=1 // pred_fallthru
      _
    // Predicated region
    $region6: #{_fused_mlp.1} parent=1 // pred_check
      _
    $region7: #{_fused_mlp.1} parent=1 // pred_check_branch
      %24 = sbr.rel (0) target = $region9
    $region8: #{_fused_mlp.1} parent=1 // pred_region
      %s26 = ssub.s32 1024, 1024
      %27 = vsyncadd [#allocation6], %s26
      %s28 = sshll.u32 [#allocation5], 4
      %s29 = int_to_ptr.vmem [resolvable:$true] %s28
      %34 = dma.hbm_to_vmem [thread:$0]  %s1, 1024, %s29, [#allocation6], 64, 64, 4
    $region9: #{_fused_mlp.1} parent=1 // pred_fallthru
      _
    // Predicated region
    $region10: #{_fused_mlp.1} parent=1 // pred_check
      _
    $region11: #{_fused_mlp.1} parent=1 // pred_check_branch
      %36 = sbr.rel (0) target = $region13
    $region12: #{_fused_mlp.1} parent=1 // pred_region
      _
    $region13: #{_fused_mlp.1} parent=1 // pred_fallthru
      _
    // Predicated region
    $region14: #{_fused_mlp.1} parent=1 // pred_check
      _
    $region15: #{_fused_mlp.1} parent=1 // pred_check_branch
      %38 = sbr.rel (0) target = $region17
    $region16: #{_fused_mlp.1} parent=1 // pred_region
      %s40 = ssub.s32 1024, 1024
      %41 = vsyncadd [#allocation6], %s40
      %s42 = sshll.u32 [#allocation7], 4
      %s43 = int_to_ptr.vmem [resolvable:$true] %s42
      %48 = dma.hbm_to_vmem [thread:$0]  %s3, 1024, %s43, [#allocation6], 64, 64, 4
    $region17: #{_fused_mlp.1} parent=1 // pred_fallthru
      _
    // Predicated region
    $region18: #{_fused_mlp.1} parent=1 // pred_check
      _
    $region19: #{_fused_mlp.1} parent=1 // pred_check_branch
      %50 = sbr.rel (0) target = $region21
    $region20: #{_fused_mlp.1} parent=1 // pred_region
      _
    $region21: #{_fused_mlp.1} parent=1 // pred_fallthru
      _
    // Predicated region
    $region22: #{_fused_mlp.1} parent=1 // pred_check
      _
    $region23: #{_fused_mlp.1} parent=1 // pred_check_branch
      %52 = sbr.rel (0) target = $region25
    $region24: #{_fused_mlp.1} parent=1 // pred_region
      %53 = dma.done [#allocation3], 128
    $region25: #{_fused_mlp.1} parent=1 // pred_fallthru
      _
    // Predicated region
    $region26: #{_fused_mlp.1} parent=1 // pred_check
      _
    $region27: #{_fused_mlp.1} parent=1 // pred_check_branch
      %55 = sbr.rel (0) target = $region29
    $region28: #{_fused_mlp.1} parent=1 // pred_region
      %56 = dma.done [#allocation6], 1024
    $region29: #{_fused_mlp.1} parent=1 // pred_fallthru
      _
    // Predicated region
    $region30: #{_fused_mlp.1} parent=1 // pred_check
      _
    $region31: #{_fused_mlp.1} parent=1 // pred_check_branch
      %58 = sbr.rel (0) target = $region33
    $region32: #{_fused_mlp.1} parent=1 // pred_region
      %59 = dma.done [#allocation6], 1024
    $region33: #{_fused_mlp.1} parent=1 // pred_fallthru
      _
    %v61 = vld [vmem:[#allocation2] sm:$0xff]
    %v62 = vld [vmem:[#allocation5] sm:$0xf]
    %v63 = vld [vmem:[#allocation5 + $0x4] sm:$0xf]
    %v64 = vld [vmem:[#allocation5 + $0x8] sm:$0xf]
    %v65 = vld [vmem:[#allocation5 + $0xc] sm:$0xf]
    %v66 = vld [vmem:[#allocation5 + $0x10] sm:$0xf]
    %v67 = vld [vmem:[#allocation5 + $0x14] sm:$0xf]
    %v68 = vld [vmem:[#allocation5 + $0x18] sm:$0xf]
    %v69 = vld [vmem:[#allocation5 + $0x1c] sm:$0xf]
    %v70 = vld [vmem:[#allocation5 + $0x20] sm:$0xf]
    %v71 = vld [vmem:[#allocation5 + $0x24] sm:$0xf]
    %v72 = vld [vmem:[#allocation5 + $0x28] sm:$0xf]
    %v73 = vld [vmem:[#allocation5 + $0x2c] sm:$0xf]
    %v74 = vld [vmem:[#allocation5 + $0x30] sm:$0xf]
    %v75 = vld [vmem:[#allocation5 + $0x34] sm:$0xf]
    %v76 = vld [vmem:[#allocation5 + $0x38] sm:$0xf]
    %v77 = vld [vmem:[#allocation5 + $0x3c] sm:$0xf]
    %v78 = vld [vmem:[%s2] sm:$0x1]
    %v79 = vpack.c.bf16 %v61, %v61
    %v81 = vlaneseq
    %v82 = vshrl.u32 %v81, 7
    %v83 = vsub.s32 0, %v82
    %v84 = vrot.slane %v78, %v83
    %v102 = vunpack.c.l.b16 %v62
    %v103 = vunpack.c.l.b16 %v63
    %v104 = vunpack.c.l.b16 %v64
    %v105 = vunpack.c.l.b16 %v65
    %v106 = vunpack.c.l.b16 %v66
    %v107 = vunpack.c.l.b16 %v67
    %v108 = vunpack.c.l.b16 %v68
    %v109 = vunpack.c.l.b16 %v69
    %v110 = vunpack.c.l.b16 %v70
    %v111 = vunpack.c.l.b16 %v71
    %v112 = vunpack.c.l.b16 %v72
    %v113 = vunpack.c.l.b16 %v73
    %v114 = vunpack.c.l.b16 %v74
    %v115 = vunpack.c.l.b16 %v75
    %v116 = vunpack.c.l.b16 %v76
    %v117 = vunpack.c.l.b16 %v77
    %v118 = vpack.c.b16 %v103, %v102
    %v119 = vpack.c.b16 %v105, %v104
    %v120 = vpack.c.b16 %v107, %v106
    %v121 = vpack.c.b16 %v109, %v108
    %v122 = vpack.c.b16 %v111, %v110
    %v123 = vpack.c.b16 %v113, %v112
    %v124 = vpack.c.b16 %v115, %v114
    %v125 = vpack.c.b16 %v117, %v116
    %134 = vmatprep.subr.bf16.mxu0 0
    %135 = vmatpush1.bf16.msra.mxu0 %v118
    %136 = vmatprep.subr.bf16.mxu0 0
    %137 = vmatpush1.bf16.msra.mxu0 %v119
    %138 = vmatprep.subr.bf16.mxu0 0
    %139 = vmatpush1.bf16.msra.mxu0 %v120
    %140 = vmatprep.subr.bf16.mxu0 0
    %141 = vmatpush1.bf16.msra.mxu0 %v121
    %142 = vmatprep.subr.bf16.mxu0 0
    %143 = vmatpush1.bf16.msra.mxu0 %v122
    %144 = vmatprep.subr.bf16.mxu0 0
    %145 = vmatpush1.bf16.msra.mxu0 %v123
    %146 = vmatprep.subr.bf16.mxu0 0
    %147 = vmatpush1.bf16.msra.mxu0 %v124
    %148 = vmatprep.subr.bf16.mxu0 0
    %149 = vmatpush1.bf16.msra.mxu0 %v125
    %150 = vmatprep.subr.bf16.mxu0 0
    %151 = vmatpush1.bf16.msra.mxu0 0
    %152 = vmatprep.subr.bf16.mxu0 0
    %153 = vmatpush1.bf16.msra.mxu0 0
    %154 = vmatprep.subr.bf16.mxu0 0
    %155 = vmatpush1.bf16.msra.mxu0 0
    %156 = vmatprep.subr.bf16.mxu0 0
    %157 = vmatpush1.bf16.msra.mxu0 0
    %158 = vmatprep.subr.bf16.mxu0 0
    %159 = vmatpush1.bf16.msra.mxu0 0
    %160 = vmatprep.subr.bf16.mxu0 0
    %161 = vmatpush1.bf16.msra.mxu0 0
    %162 = vmatprep.subr.bf16.mxu0 0
    %163 = vmatpush1.bf16.msra.mxu0 0
    %164 = vmatprep.subr.bf16.mxu0 0
    %165 = vmatpush1.bf16.msra.mxu0 0
    %166 = vmatprep.mubr.bf16.mxu0 0
    %167 = vmatmul.mubr.bf16.gmra.mrb[0].mxu0 %v79
    %v168 = vpop.f32.mrb[0].mxu0
    %v169 = vadd.f32 %v84, %v168
    %v170 = vpop.f32.mrb[0].mxu0
    %v171 = vpop.f32.mrb[0].mxu0
    %v172 = vpop.f32.mrb[0].mxu0
    %173 = vdwg.mxu0
    %v174 = vmax.f32 %v169, 0.0
    %v175 = vld [vmem:[#allocation7] sm:$0xf]
    %v176 = vld [vmem:[#allocation7 + $0x4] sm:$0xf]
    %v177 = vld [vmem:[#allocation7 + $0x8] sm:$0xf]
    %v178 = vld [vmem:[#allocation7 + $0xc] sm:$0xf]
    %v179 = vld [vmem:[#allocation7 + $0x10] sm:$0xf]
    %v180 = vld [vmem:[#allocation7 + $0x14] sm:$0xf]
    %v181 = vld [vmem:[#allocation7 + $0x18] sm:$0xf]
    %v182 = vld [vmem:[#allocation7 + $0x1c] sm:$0xf]
    %v183 = vld [vmem:[#allocation7 + $0x20] sm:$0xf]
    %v184 = vld [vmem:[#allocation7 + $0x24] sm:$0xf]
    %v185 = vld [vmem:[#allocation7 + $0x28] sm:$0xf]
    %v186 = vld [vmem:[#allocation7 + $0x2c] sm:$0xf]
    %v187 = vld [vmem:[#allocation7 + $0x30] sm:$0xf]
    %v188 = vld [vmem:[#allocation7 + $0x34] sm:$0xf]
    %v189 = vld [vmem:[#allocation7 + $0x38] sm:$0xf]
    %v190 = vld [vmem:[#allocation7 + $0x3c] sm:$0xf]
    %v191 = vld [vmem:[%s4] sm:$0x1]
    %v192 = vpack.c.bf16 %v174, %v174
    %v194 = vlaneseq
    %v195 = vshrl.u32 %v194, 7
    %v196 = vsub.s32 0, %v195
    %v197 = vrot.slane %v191, %v196
    %v215 = vunpack.c.l.b16 %v175
    %v216 = vunpack.c.l.b16 %v176
    %v217 = vunpack.c.l.b16 %v177
    %v218 = vunpack.c.l.b16 %v178
    %v219 = vunpack.c.l.b16 %v179
    %v220 = vunpack.c.l.b16 %v180
    %v221 = vunpack.c.l.b16 %v181
    %v222 = vunpack.c.l.b16 %v182
    %v223 = vunpack.c.l.b16 %v183
    %v224 = vunpack.c.l.b16 %v184
    %v225 = vunpack.c.l.b16 %v185
    %v226 = vunpack.c.l.b16 %v186
    %v227 = vunpack.c.l.b16 %v187
    %v228 = vunpack.c.l.b16 %v188
    %v229 = vunpack.c.l.b16 %v189
    %v230 = vunpack.c.l.b16 %v190
    %v231 = vpack.c.b16 %v216, %v215
    %v232 = vpack.c.b16 %v218, %v217
    %v233 = vpack.c.b16 %v220, %v219
    %v234 = vpack.c.b16 %v222, %v221
    %v235 = vpack.c.b16 %v224, %v223
    %v236 = vpack.c.b16 %v226, %v225
    %v237 = vpack.c.b16 %v228, %v227
    %v238 = vpack.c.b16 %v230, %v229
    %247 = vmatprep.subr.bf16.mxu0 0
    %248 = vmatpush1.bf16.msra.mxu0 %v231
    %249 = vmatprep.subr.bf16.mxu0 0
    %250 = vmatpush1.bf16.msra.mxu0 %v232
    %251 = vmatprep.subr.bf16.mxu0 0
    %252 = vmatpush1.bf16.msra.mxu0 %v233
    %253 = vmatprep.subr.bf16.mxu0 0
    %254 = vmatpush1.bf16.msra.mxu0 %v234
    %255 = vmatprep.subr.bf16.mxu0 0
    %256 = vmatpush1.bf16.msra.mxu0 %v235
    %257 = vmatprep.subr.bf16.mxu0 0
    %258 = vmatpush1.bf16.msra.mxu0 %v236
    %259 = vmatprep.subr.bf16.mxu0 0
    %260 = vmatpush1.bf16.msra.mxu0 %v237
    %261 = vmatprep.subr.bf16.mxu0 0
    %262 = vmatpush1.bf16.msra.mxu0 %v238
    %263 = vmatprep.subr.bf16.mxu0 0
    %264 = vmatpush1.bf16.msra.mxu0 0
    %265 = vmatprep.subr.bf16.mxu0 0
    %266 = vmatpush1.bf16.msra.mxu0 0
    %267 = vmatprep.subr.bf16.mxu0 0
    %268 = vmatpush1.bf16.msra.mxu0 0
    %269 = vmatprep.subr.bf16.mxu0 0
    %270 = vmatpush1.bf16.msra.mxu0 0
    %271 = vmatprep.subr.bf16.mxu0 0
    %272 = vmatpush1.bf16.msra.mxu0 0
    %273 = vmatprep.subr.bf16.mxu0 0
    %274 = vmatpush1.bf16.msra.mxu0 0
    %275 = vmatprep.subr.bf16.mxu0 0
    %276 = vmatpush1.bf16.msra.mxu0 0
    %277 = vmatprep.subr.bf16.mxu0 0
    %278 = vmatpush1.bf16.msra.mxu0 0
    %279 = vmatprep.mubr.bf16.mxu0 0
    %280 = vmatmul.mubr.bf16.gmra.mrb[0].mxu0 %v192
    %v281 = vpop.f32.mrb[0].mxu0
    %v282 = vadd.f32 %v197, %v281
    %v283 = vpop.f32.mrb[0].mxu0
    %v284 = vpop.f32.mrb[0].mxu0
    %v285 = vpop.f32.mrb[0].mxu0
    %286 = vdwg.mxu0
    %v287 = vmax.f32 %v282, 0.0
    %288 = vst [vmem:[#allocation8] sm:$0xff] %v287
    // Predicated region
    $region34: #{_fused_mlp.1} parent=1 // pred_check
      _
    $region35: #{_fused_mlp.1} parent=1 // pred_check_branch
      %290 = sbr.rel (0) target = $region37
    $region36: #{_fused_mlp.1} parent=1 // pred_region
      %s292 = ssub.s32 128, 128
      %293 = vsyncadd [#allocation4], %s292
      %s295 = sshll.u32 [#allocation8], 4
      %s296 = int_to_ptr.vmem [resolvable:$true] %s295
      %298 = dma.vmem_to_hbm [thread:$0]  %s296, 128, %s5, [#allocation4]
    $region37: #{_fused_mlp.1} parent=1 // pred_fallthru
      _
    // Predicated region
    $region38: #{_fused_mlp.1} parent=1 // pred_check
      _
    $region39: #{_fused_mlp.1} parent=1 // pred_check_branch
      %300 = sbr.rel (0) target = $region41
    $region40: #{_fused_mlp.1} parent=1 // pred_region
      %301 = dma.done [#allocation4], 128
    $region41: #{_fused_mlp.1} parent=1 // pred_fallthru
      _
    %302 = vsyncpa [#allocation3], 1
    %303 = vsyncpa [#allocation6], 1
    %304 = vsyncpa [#allocation4], 1

</llo_original>
